<compile_context>
chip_gen: v6e
topology: v6e:2x2x1
jax: 0.10.0
libtpu: 0.0.40
codegen_flags: <defaults>
</compile_context>

<pallas_src>
import numpy as np
import jax
import jax.numpy as jnp
from jax.experimental import pallas as pl
from jax.experimental.pallas import tpu as pltpu

TXT_WORD, TXT_LEMMA, TXT_POS, TXT_NER = 0, 1, 2, 3


def _round_up(x, m):
    return (x + m - 1) // m * m


def _sigmoid(x):
    # exp goes to the EUP slot; i,f are evaluated over one contiguous slice by the caller.
    return 1.0 / (1.0 + jnp.exp(-x))


def _vmem_limit_bytes():
    """Chip-aware scoped-VMEM limit: ~3/4 of physical VMEM, capped at 96 MiB.
    -> ~96 MiB on v5e/v6e (128 MiB physical), ~48 MiB on v7x (64 MiB physical)."""
    cap = 64 * 1024 * 1024
    try:
        info = pltpu.get_tpu_info()
        cap = int(getattr(info, "vmem_capacity_bytes", cap) or cap)
    except Exception:
        pass
    return int(min(96 * 1024 * 1024, cap * 3 // 4))


# --------------------------------------------------------------------------- #
# Kernel 1: fused input->gate projection (all 4 gates x both directions, one matmul)
# --------------------------------------------------------------------------- #
def _gate_proj_kernel(x_ref, w_ref, b_ref, o_ref):
    x = x_ref[...]                                   # [tile, D]
    w = w_ref[...]                                   # [D, num_dir*4H]  (lane-dense output)
    o_ref[...] = (jnp.dot(x, w, preferred_element_type=jnp.float32)
                  + b_ref[...]).astype(o_ref.dtype)


def fused_gate_proj(x, w, b, *, max_row_tile=512):
    """x:[N, D] f32, w:[D, G] f32, b:[G] f32 -> [N, G] f32 = x @ w + b.

    G = num_directions * 4 * hidden (all gate pre-activations fused into one lane-dense
    output).  Rows tiled with a streaming 512-row tile (cdiv grid + zero padding), shrunk
    only if double-buffered x/out tiles + the resident weight would not fit the per-chip
    VMEM budget.
    """
    N, D = x.shape
    Dw, G = w.shape
    assert D == Dw
    vmem_limit = _vmem_limit_bytes()

    # TODO(synk): for very large hidden sizes (D*G*4 alone exceeding the VMEM budget) the
    # weight should be column-tiled over a second grid axis; not needed at these sizes.
    n8 = _round_up(max(N, 1), 8)
    row_tile = min(int(max_row_tile), n8)
    row_tile = _round_up(row_tile, 8)

    def _footprint(rt):          # 2x double-buffered x/out tiles + resident weight + bias
        return 4 * (2 * rt * D + 2 * rt * G + D * G + G)

    while row_tile > 8 and _footprint(row_tile) > int(0.8 * vmem_limit):
        row_tile = max(8, _round_up(row_tile // 2, 8))

    grid = pl.cdiv(N, row_tile)
    n_pad = grid * row_tile
    if n_pad != N:
        x = jnp.pad(x, ((0, n_pad - N), (0, 0)))

    out = pl.pallas_call(
        _gate_proj_kernel,
        out_shape=jax.ShapeDtypeStruct((n_pad, G), jnp.float32),
        grid_spec=pltpu.PrefetchScalarGridSpec(
            num_scalar_prefetch=0,
            grid=(grid,),
            in_specs=[
                pl.BlockSpec((row_tile, D), lambda i: (i, 0)),   # x tile (pipelined)
                # TODO(synk): single-buffer resident w/b via pipeline_mode=pl.Buffered(1).
                pl.BlockSpec((D, G), lambda i: (0, 0)),          # resident weights
                pl.BlockSpec((1, G), lambda i: (0, 0)),          # resident bias
            ],
            out_specs=pl.BlockSpec((row_tile, G), lambda i: (i, 0)),
        ),
        compiler_params=pltpu.CompilerParams(
            dimension_semantics=("parallel",),
            vmem_limit_bytes=vmem_limit),
    )(x, w, b.reshape(1, G))
    return out[:N]


# --------------------------------------------------------------------------- #
# Kernel 2: time-blocked LSTM recurrence, both directions on a parallel grid axis
# --------------------------------------------------------------------------- #
def _lstm_scan_kernel(bs_ref, xp_ref, whh_ref, hout_ref, h_scr, c_scr):
    d = pl.program_id(0)                  # direction: 0 = forward, 1 = backward
    tb = pl.program_id(1)                 # time-block index (processing order)
    nt = pl.num_programs(1)
    tt, Bp, _ = xp_ref.shape              # (time_tile, padded batch, 4H)
    H = whh_ref.shape[0]

    @pl.when(tb == 0)
    def _():
        h_scr[...] = jnp.zeros_like(h_scr)
        c_scr[...] = jnp.zeros_like(c_scr)

    w_hh = whh_ref[...]                                   # [H, 4H] resident
    tblk = tb + d * (nt - 1 - 2 * tb)                     # loaded time block (fwd: tb, bwd: nt-1-tb)
    t_base = tblk * tt
    row_ids = jax.lax.broadcasted_iota(jnp.int32, (Bp, H), 0)

    h = h_scr[...]
    c = c_scr[...]
    # Fully unrolled inner time loop (time-blocked scan): h/c stay in vregs across the
    # tt steps; only the final carry goes back to VMEM scratch.
    for s in range(tt):
        lt = s + d * (tt - 1 - 2 * s)                     # local step: s (fwd) / tt-1-s (bwd)
        bs_t = bs_ref[t_base + lt]                        # SMEM scalar: batch size at this t
        gates = xp_ref[lt] + jnp.dot(h, w_hh, preferred_element_type=jnp.float32)  # [Bp, 4H]
        # PyTorch gate order: i, f, g, o  (i and f share one contiguous sigmoid slice)
        sif = _sigmoid(gates[:, :2 * H])
        i_g = sif[:, :H]
        f_g = sif[:, H:]
        g_g = jnp.tanh(gates[:, 2 * H:3 * H])
        o_g = _sigmoid(gates[:, 3 * H:])
        c_new = f_g * c + i_g * g_g
        h_new = o_g * jnp.tanh(c_new)
        valid = row_ids < bs_t                            # PackedSequence validity mask
        h = jnp.where(valid, h_new, h)
        c = jnp.where(valid, c_new, c)
        hout_ref[lt] = h.astype(hout_ref.dtype)
    h_scr[...] = h
    c_scr[...] = c


def lstm_scan(xp, w_hh, batch_sizes, *, max_time_tile=32):
    """xp:[T, Bp, nd*4H] f32, w_hh:[nd, H, 4H] f32, batch_sizes: len-T ints.
    Returns h:[nd, T_pad, Bp, H] f32 (T_pad >= T; padded steps just hold the carry)."""
    T, Bp, G = xp.shape
    nd, H, G4 = w_hh.shape
    assert G4 == 4 * H and G == nd * G4 and Bp % 8 == 0
    assert nd == 1 or (4 * H) % 128 == 0, "per-direction 4H column block must be lane-aligned"

    # Balanced time blocking: nt grid steps of tt timesteps each (tt <= max_time_tile).
    nt = pl.cdiv(T, max_time_tile)
    tt = pl.cdiv(T, nt)
    t_pad = nt * tt
    if t_pad != T:
        xp = jnp.pad(xp, ((0, t_pad - T), (0, 0), (0, 0)))
    bs_pad = np.zeros((t_pad,), np.int32)
    bs_pad[:T] = np.asarray(batch_sizes, np.int32)        # padded steps -> batch size 0
    bs_pad = jnp.asarray(bs_pad)

    vmem_limit = _vmem_limit_bytes()
    tmap = lambda d, tb: tb + d * (nt - 1 - 2 * tb)       # fwd: tb, bwd: nt-1-tb

    return pl.pallas_call(
        _lstm_scan_kernel,
        out_shape=jax.ShapeDtypeStruct((nd, t_pad, Bp, H), jnp.float32),
        grid_spec=pltpu.PrefetchScalarGridSpec(
            num_scalar_prefetch=1,                        # batch_sizes -> SMEM
            grid=(nd, nt),
            in_specs=[
                # per-direction gate pre-activations: time block reversed for the backward
                # direction and the direction's 4H columns selected by the index_map
                # (no XLA jnp.flip / slice copies).
                pl.BlockSpec((tt, Bp, 4 * H), lambda d, tb, bs: (tmap(d, tb), 0, d)),
                # resident per-direction recurrent weights
                # TODO(synk): single-buffer via pipeline_mode=pl.Buffered(1) when stable.
                pl.BlockSpec((None, H, 4 * H), lambda d, tb, bs: (d, 0, 0)),
            ],
            out_specs=pl.BlockSpec((None, tt, Bp, H),
                                   lambda d, tb, bs: (d, tmap(d, tb), 0, 0)),
            scratch_shapes=[pltpu.VMEM((Bp, H), jnp.float32),     # h carry across blocks
                            pltpu.VMEM((Bp, H), jnp.float32)],    # c carry across blocks
        ),
        compiler_params=pltpu.CompilerParams(
            # direction axis is independent -> megacore-parallel (near-2x on v7x);
            # time axis carries state -> arbitrary (sequential).
            dimension_semantics=("parallel", "arbitrary"),
            vmem_limit_bytes=vmem_limit),
    )(bs_pad, xp, w_hh)


# --------------------------------------------------------------------------- #
# Pure-JAX references (same math, no Pallas) for correctness checking
# --------------------------------------------------------------------------- #
def _ref_gate_proj(x, w, b):
    return x @ w + b[None, :]


def _ref_lstm_scan(xp, w_hh, batch_sizes):
    """xp:[T,Bp,nd*4H], w_hh:[nd,H,4H] -> [nd, T, Bp, H] (same masking semantics)."""
    T, Bp, _ = xp.shape
    nd, H, _ = w_hh.shape
    bs = np.asarray(batch_sizes)
    outs = []
    for dd in range(nd):
        xp_d = xp[..., dd * 4 * H:(dd + 1) * 4 * H]
        h = jnp.zeros((Bp, H), jnp.float32)
        c = jnp.zeros((Bp, H), jnp.float32)
        out = [None] * T
        order = range(T) if dd == 0 else range(T - 1, -1, -1)
        for t in order:
            gates = xp_d[t] + h @ w_hh[dd]
            sif = _sigmoid(gates[:, :2 * H])
            i_g, f_g = sif[:, :H], sif[:, H:]
            g_g = jnp.tanh(gates[:, 2 * H:3 * H])
            o_g = _sigmoid(gates[:, 3 * H:])
            c_new = f_g * c + i_g * g_g
            h_new = o_g * jnp.tanh(c_new)
            valid = jnp.arange(Bp)[:, None] < int(bs[t])
            h = jnp.where(valid, h_new, h)
            c = jnp.where(valid, c_new, c)
            out[t] = h
        outs.append(jnp.stack(out, axis=0))
    return jnp.stack(outs, axis=0)


# --------------------------------------------------------------------------- #
# Model
# --------------------------------------------------------------------------- #
class SentenceEncoderPallas:
    """JAX/Pallas re-implementation of SentenceEncoder.forward (eval mode, hidden=None)."""

    def __init__(self, *, txt_rnn_size, layers, brnn,
                 word_vocab, lemma_vocab, pos_vocab, ner_vocab,
                 word_dim, lemma_dim, pos_dim, ner_dim, key):
        self.layers = layers
        self.num_directions = 2 if brnn else 1
        assert txt_rnn_size % self.num_directions == 0
        self.hidden_size = txt_rnn_size // self.num_directions
        self.txt_rnn_size = txt_rnn_size
        self.input_size = word_dim + lemma_dim + pos_dim + ner_dim

        keys = jax.random.split(key, 4 + 3 * layers * self.num_directions)
        ki = iter(keys)
        self.word_fix_lut = 0.1 * jax.random.normal(next(ki), (word_vocab, word_dim), jnp.float32)
        self.lemma_lut = 0.1 * jax.random.normal(next(ki), (lemma_vocab, lemma_dim), jnp.float32)
        self.pos_lut = 0.1 * jax.random.normal(next(ki), (pos_vocab, pos_dim), jnp.float32)
        self.ner_lut = 0.1 * jax.random.normal(next(ki), (ner_vocab, ner_dim), jnp.float32)

        H = self.hidden_size
        k = 1.0 / float(np.sqrt(H))
        # Weights stored transposed vs torch nn.LSTM: w_ih [in, 4H], w_hh [H, 4H].
        # NOTE: when porting real nn.LSTM weights, bias must be b_ih + b_hh (summed).
        # TODO(synk): bf16 weights/xp would halve HBM traffic; kept f32 for exact parity.
        self.w_ih_all = []   # per layer: [in_l, num_dir*4H]  (both directions fused)
        self.b_all = []      # per layer: [num_dir*4H]
        self.w_hh = []       # per layer: [num_dir, H, 4H]
        for l in range(layers):
            in_l = self.input_size if l == 0 else self.num_directions * H
            w_ih_dirs, b_dirs, w_hh_dirs = [], [], []
            for _ in range(self.num_directions):
                w_ih_dirs.append(jax.random.uniform(next(ki), (in_l, 4 * H), jnp.float32, -k, k))
                b_dirs.append(jax.random.uniform(next(ki), (4 * H,), jnp.float32, -k, k))
                w_hh_dirs.append(jax.random.uniform(next(ki), (H, 4 * H), jnp.float32, -k, k))
            self.w_ih_all.append(jnp.concatenate(w_ih_dirs, axis=1))
            self.b_all.append(jnp.concatenate(b_dirs, axis=0))
            self.w_hh.append(jnp.stack(w_hh_dirs, axis=0))

    def __call__(self, packed_data, batch_sizes, hidden=None, *, use_pallas=True):
        # TODO(synk): non-zero initial (h0, c0) not modeled; module is used with hidden=None.
        assert hidden is None
        # TODO(synk): data_dropout(alpha) and nn.Dropout are training-only; identity at inference.
        bs = np.asarray(batch_sizes, dtype=np.int64)
        assert np.all(np.diff(bs) <= 0), "PackedSequence batch_sizes must be non-increasing"
        T = int(bs.shape[0])
        B = int(bs[0])
        Bp = _round_up(B, 8)                       # sublane-pad the batch dimension
        H = self.hidden_size
        nd = self.num_directions
        nd4H = nd * 4 * H

        # PackedSequence bookkeeping: packed row n <-> (t, b) with b < batch_sizes[t]
        flat_idx_np = np.concatenate(
            [t * Bp + np.arange(int(bs[t])) for t in range(T)]).astype(np.int32)
        flat_idx = jnp.asarray(flat_idx_np)

        # Embedding lookups directly on the PACKED rows (order: word_fix, lemma, pos, ner).
        # TODO(synk): data-dependent embedding-row gather stays in XLA (jnp.take),
        #             not a per-row Pallas DMA gather.
        emb = jnp.concatenate([
            jnp.take(self.word_fix_lut, packed_data[:, TXT_WORD], axis=0),
            jnp.take(self.lemma_lut, packed_data[:, TXT_LEMMA], axis=0),
            jnp.take(self.pos_lut, packed_data[:, TXT_POS], axis=0),
            jnp.take(self.ner_lut, packed_data[:, TXT_NER], axis=0),
        ], axis=-1)                                                  # [N_tokens, input_size]

        proj_fn = fused_gate_proj if use_pallas else _ref_gate_proj
        scan_fn = lstm_scan if use_pallas else _ref_lstm_scan

        x_packed = emb
        for l in range(self.layers):
            # fused input->gate projection on packed rows only (no pad-row FLOPs/traffic)
            xp_packed = proj_fn(x_packed, self.w_ih_all[l], self.b_all[l])   # [N, nd*4H]
            # scatter gate pre-activations into the padded [T, Bp, nd*4H] layout
            xp = jnp.zeros((T * Bp, nd4H), jnp.float32).at[flat_idx].set(xp_packed)
            xp = xp.reshape(T, Bp, nd4H)
            h = scan_fn(xp, self.w_hh[l], bs)                        # [nd, T_pad, Bp, H]
            h_flat = h.reshape(nd, -1, H)
            # gather back to packed rows; concat directions (torch: [h_fwd_t, h_bwd_t])
            x_packed = jnp.concatenate([h_flat[dd][flat_idx] for dd in range(nd)], axis=-1)
            # TODO(synk): inter-layer LSTM dropout is identity at inference.
        return x_packed, batch_sizes


if __name__ == "__main__":
    key = jax.random.PRNGKey(0)
    k_model, k_tok = jax.random.split(key)

    # Small shapes consistent with the module's forward
    word_vocab, lemma_vocab, pos_vocab, ner_vocab = 50, 40, 12, 8
    word_dim, lemma_dim, pos_dim, ner_dim = 16, 8, 4, 4        # input_size = 32
    txt_rnn_size, layers, brnn = 64, 2, True                   # hidden = 32 per direction

    # Packed sequence: 3 sentences with lengths (5, 4, 2) -> 11 tokens
    batch_sizes = np.array([3, 3, 2, 2, 1], dtype=np.int32)
    n_tokens = int(batch_sizes.sum())
    cols = []
    for j, v in enumerate([word_vocab, lemma_vocab, pos_vocab, ner_vocab]):
        cols.append(jax.random.randint(jax.random.fold_in(k_tok, j),
                                       (n_tokens, 1), 0, v, dtype=jnp.int32))
    packed_data = jnp.concatenate(cols, axis=1)                # [11, 4]

    model = SentenceEncoderPallas(
        txt_rnn_size=txt_rnn_size, layers=layers, brnn=brnn,
        word_vocab=word_vocab, lemma_vocab=lemma_vocab,
        pos_vocab=pos_vocab, ner_vocab=ner_vocab,
        word_dim=word_dim, lemma_dim=lemma_dim, pos_dim=pos_dim, ner_dim=ner_dim,
        key=k_model)

    out, bs_out = model(packed_data, batch_sizes)
    jax.block_until_ready(out)

    ref, _ = model(packed_data, batch_sizes, use_pallas=False)

    assert out.shape == (n_tokens, txt_rnn_size)
    assert bool(jnp.all(jnp.isfinite(out)))
    err = float(jnp.max(jnp.abs(out - ref)))
    assert jnp.allclose(out, ref, atol=1e-4, rtol=1e-4), err
    print("KERNEL_OK")
</pallas_src>

<mosaic_0001>
module attributes {stable_mosaic.version = 11 : i64} {
  func.func @_gate_proj_kernel(%arg0: i32, %arg1: memref<16x32xf32, #tpu.memory_space<vmem>>, %arg2: memref<32x256xf32, #tpu.memory_space<vmem>>, %arg3: memref<1x256xf32, #tpu.memory_space<vmem>>, %arg4: memref<16x256xf32, #tpu.memory_space<vmem>>) attributes {dimension_semantics = [#tpu.dimension_semantics<parallel>], iteration_bounds = array<i64: 1>, scalar_prefetch = 0 : i64, scratch_operands = 0 : i64, tpu.core_type = #tpu.core_type<tc>, window_params = [{transform_indices = @transform_0, window_bounds = array<i64: 16, 32>}, {pipeline_mode = #tpu.pipeline_mode<synchronous>, transform_indices = @transform_1, window_bounds = array<i64: 32, 256>}, {pipeline_mode = #tpu.pipeline_mode<synchronous>, transform_indices = @transform_2, window_bounds = array<i64: 1, 256>}, {transform_indices = @transform_3, window_bounds = array<i64: 16, 256>}]} {
    %c0 = arith.constant 0 : index
    %c0_0 = arith.constant 0 : index
    %0 = vector.load %arg1[%c0, %c0_0] : memref<16x32xf32, #tpu.memory_space<vmem>>, vector<16x32xf32>
    %c0_1 = arith.constant 0 : index
    %c0_2 = arith.constant 0 : index
    %1 = vector.load %arg2[%c0_1, %c0_2] : memref<32x256xf32, #tpu.memory_space<vmem>>, vector<32x256xf32>
    %cst = arith.constant dense<0.000000e+00> : vector<16x256xf32>
    %2 = tpu.matmul %0, %1, %cst {dimension_numbers = #tpu.dot_dimension_numbers<[1], [0], [0], [1], [0, 0, 1, 1], [], []>} : vector<16x32xf32>, vector<32x256xf32>, vector<16x256xf32> -> vector<16x256xf32>
    %c0_3 = arith.constant 0 : index
    %c0_4 = arith.constant 0 : index
    %3 = vector.load %arg3[%c0_3, %c0_4] : memref<1x256xf32, #tpu.memory_space<vmem>>, vector<1x256xf32>
    %4 = vector.broadcast %3 : vector<1x256xf32> to vector<16x256xf32>
    %5 = arith.addf %2, %4 : vector<16x256xf32>
    %c0_5 = arith.constant 0 : index
    %c0_6 = arith.constant 0 : index
    %6 = vector.load %arg4[%c0_5, %c0_6] : memref<16x256xf32, #tpu.memory_space<vmem>>, vector<16x256xf32>
    tpu.vector_store %arg4[%c0_5, %c0_6], %5 {strides = array<i32>} : memref<16x256xf32, #tpu.memory_space<vmem>>, vector<16x256xf32>,
    return
  }
  func.func @transform_0(%arg0: i32) -> (i32, i32) {
    %c0_i32 = arith.constant 0 : i32
    %c0_i32_0 = arith.constant 0 : i32
    return %arg0, %c0_i32 : i32, i32
  }
  func.func @transform_1(%arg0: i32) -> (i32, i32) {
    %c0_i32 = arith.constant 0 : i32
    %c0_i32_0 = arith.constant 0 : i32
    %c0_i32_1 = arith.constant 0 : i32
    return %c0_i32, %c0_i32_0 : i32, i32
  }
  func.func @transform_2(%arg0: i32) -> (i32, i32) {
    %c0_i32 = arith.constant 0 : i32
    %c0_i32_0 = arith.constant 0 : i32
    %c0_i32_1 = arith.constant 0 : i32
    return %c0_i32, %c0_i32_0 : i32, i32
  }
  func.func @transform_3(%arg0: i32) -> (i32, i32) {
    %c0_i32 = arith.constant 0 : i32
    %c0_i32_0 = arith.constant 0 : i32
    return %arg0, %c0_i32 : i32, i32
  }
}

</mosaic_0001>

<llo_original>
// kernel: tpu_custom_call.1
$region0: #{tpu_custom_call.1}
  #allocation0 [shape = 'u32[]', space=smem, size = 0x4, offset = 0x4, fixed_abs, tag = 'smem constant byte address 0x4 - core index']
  #allocation1 [shape = 'u32[144,128]{1,0:T(1,128)}', space=vmem, size = 0x12000, scoped, tag = 'internal scratch']
  %s0 = inlined_call_operand.hbm [shape: f32[16,32], index: 0, kind: input, shape index: {}]
  %s1 = inlined_call_operand.hbm [shape: f32[32,256], index: 1, kind: input, shape index: {}]
  %s2 = inlined_call_operand.vmem [shape: f32[1,256], index: 2, kind: input, shape index: {}]
  %s3 = inlined_call_operand.hbm [shape: f32[16,256], index: 3, kind: output, shape index: {}]
  %s4 = sld [smem:[#allocation0]]
  $region30: #{tpu_custom_call.1} parent=0
    _
  %s6 = ssub.s32 1, %s4
  %s7 = scalar_select 0, %s6, %s4
  $region1: #{tpu_custom_call.1} parent=0
    #allocation2 [shape = 'u8[8192]{0}', space=vmem, size = 0x2000, scoped, tag = 'input window, operand 0, single buffered']
    #allocation3 [shape = 's32[1]{0}', space=sflag, size = 0x4, scoped, tag = 'scoped memory for tpu_custom_call.1']
    #allocation4 [shape = 's32[1]{0}', space=sflag, size = 0x4, scoped, tag = 'scoped memory for tpu_custom_call.1']
    #allocation5 [shape = 'u8[32768]{0}', space=vmem, size = 0x8000, scoped, tag = 'input window, operand 1, single buffered']
    #allocation6 [shape = 's32[1]{0}', space=sflag, size = 0x4, scoped, tag = 'scoped memory for tpu_custom_call.1']
    #allocation7 [shape = 'u8[16384]{0}', space=vmem, size = 0x4000, scoped, tag = 'output window, operand 0, single buffered']
    %8 = vsyncpa [#allocation3], 0
    %9 = vsyncpa [#allocation6], 0
    %10 = vsyncpa [#allocation4], 0
    // Predicated region
    $region2: #{tpu_custom_call.1} parent=1 // pred_check
      _
    $region3: #{tpu_custom_call.1} parent=1 // pred_check_branch
      %12 = sbr.rel (0) target = $region5
    $region4: #{tpu_custom_call.1} parent=1 // pred_region
      %s14 = ssub.s32 256, 256
      %15 = vsyncadd [#allocation3], %s14
      %s16 = sshll.u32 [#allocation2], 4
      %s17 = int_to_ptr.vmem [resolvable:$true] %s16
      %22 = dma.hbm_to_vmem [thread:$0]  %s0, 256, %s17, [#allocation3], 128, 128, 8
    $region5: #{tpu_custom_call.1} parent=1 // pred_fallthru
      _
    // Predicated region
    $region6: #{tpu_custom_call.1} parent=1 // pred_check
      _
    $region7: #{tpu_custom_call.1} parent=1 // pred_check_branch
      %24 = sbr.rel (0) target = $region9
    $region8: #{tpu_custom_call.1} parent=1 // pred_region
      %s26 = ssub.s32 1024, 1024
      %27 = vsyncadd [#allocation6], %s26
      %s28 = sshll.u32 [#allocation5], 4
      %s29 = int_to_ptr.vmem [resolvable:$true] %s28
      %34 = dma.hbm_to_vmem [thread:$0]  %s1, 1024, %s29, [#allocation6], 256, 256, 16
    $region9: #{tpu_custom_call.1} parent=1 // pred_fallthru
      _
    // Predicated region
    $region10: #{tpu_custom_call.1} parent=1 // pred_check
      _
    $region11: #{tpu_custom_call.1} parent=1 // pred_check_branch
      %36 = sbr.rel (0) target = $region13
    $region12: #{tpu_custom_call.1} parent=1 // pred_region
      _
    $region13: #{tpu_custom_call.1} parent=1 // pred_fallthru
      _
    // Predicated region
    $region14: #{tpu_custom_call.1} parent=1 // pred_check
      _
    $region15: #{tpu_custom_call.1} parent=1 // pred_check_branch
      %38 = sbr.rel (0) target = $region17
    $region16: #{tpu_custom_call.1} parent=1 // pred_region
      %39 = dma.done [#allocation3], 256
    $region17: #{tpu_custom_call.1} parent=1 // pred_fallthru
      _
    // Predicated region
    $region18: #{tpu_custom_call.1} parent=1 // pred_check
      _
    $region19: #{tpu_custom_call.1} parent=1 // pred_check_branch
      %41 = sbr.rel (0) target = $region21
    $region20: #{tpu_custom_call.1} parent=1 // pred_region
      %42 = dma.done [#allocation6], 1024
    $region21: #{tpu_custom_call.1} parent=1 // pred_fallthru
      _
    %v43 = vld [vmem:[#allocation2] sm:$0xff]
    %v44 = vld [vmem:[#allocation2 + $0x8] sm:$0xff]
    %v45 = vld [vmem:[#allocation5] sm:$0xff]
    %v46 = vld [vmem:[#allocation5 + $0x8] sm:$0xff]
    %v47 = vld [vmem:[#allocation5 + $0x10] sm:$0xff]
    %v48 = vld [vmem:[#allocation5 + $0x18] sm:$0xff]
    %v49 = vld [vmem:[#allocation5 + $0x20] sm:$0xff]
    %v50 = vld [vmem:[#allocation5 + $0x28] sm:$0xff]
    %v51 = vld [vmem:[#allocation5 + $0x30] sm:$0xff]
    %v52 = vld [vmem:[#allocation5 + $0x38] sm:$0xff]
    %v53 = vld [vmem:[%s2] sm:$0x3]
    %v55 = vlaneseq
    %v56 = vshrl.u32 %v55, 7
    %v57 = vsub.s32 0, %v56
    %v58 = vrot.slane %v53, %v57
    %v59 = vlaneseq
    %v60 = vshrl.u32 %v59, 7
    %v61 = vsub.s32 1, %v60
    %v62 = vrot.slane %v53, %v61
    %vm65 = vcmask 261120
    %v67 = vsel %vm65, %v43, 0
    %v70 = vsel %vm65, %v44, 0
    %72 = vmatprep.subr.mxu0 0.0
    %73 = vmatpush1.msra.mxu0 0.0
    %74 = vmatprep.subr.mxu0 0.0
    %75 = vmatpush1.msra.mxu0 0.0
    %76 = vmatprep.subr.mxu0 0.0
    %77 = vmatpush1.msra.mxu0 0.0
    %78 = vmatprep.subr.mxu0 0.0
    %79 = vmatpush1.msra.mxu0 0.0
    %80 = vmatprep.subr.mxu0 0.0
    %81 = vmatpush1.msra.mxu0 0.0
    %82 = vmatprep.subr.mxu0 0.0
    %83 = vmatpush1.msra.mxu0 0.0
    %84 = vmatprep.subr.mxu0 0.0
    %85 = vmatpush1.msra.mxu0 0.0
    %86 = vmatprep.subr.mxu0 0.0
    %87 = vmatpush1.msra.mxu0 0.0
    %88 = vmatprep.subr.mxu0 0.0
    %89 = vmatpush1.msra.mxu0 0.0
    %90 = vmatprep.subr.mxu0 0.0
    %91 = vmatpush1.msra.mxu0 0.0
    %92 = vmatprep.subr.mxu0 0.0
    %93 = vmatpush1.msra.mxu0 0.0
    %94 = vmatprep.subr.mxu0 0.0
    %95 = vmatpush1.msra.mxu0 0.0
    %96 = vmatprep.subr.mxu0 %v52
    %97 = vmatpush1.msra.mxu0 %v51
    %98 = vmatprep.subr.mxu0 %v50
    %99 = vmatpush1.msra.mxu0 %v49
    %100 = vmatprep.subr.mxu0 %v48
    %101 = vmatpush1.msra.mxu0 %v47
    %102 = vmatprep.subr.mxu0 %v46
    %103 = vmatpush1.msra.mxu0 %v45
    %104 = vmatprep.subr.mxu0 0.0
    %105 = vmatpush2.msra.mxu0 0.0
    %106 = vmatprep.subr.mxu0 0.0
    %107 = vmatpush2.msra.mxu0 0.0
    %108 = vmatprep.subr.mxu0 0.0
    %109 = vmatpush2.msra.mxu0 0.0
    %110 = vmatprep.subr.mxu0 0.0
    %111 = vmatpush2.msra.mxu0 0.0
    %112 = vmatprep.subr.mxu0 0.0
    %113 = vmatpush2.msra.mxu0 0.0
    %114 = vmatprep.subr.mxu0 0.0
    %115 = vmatpush2.msra.mxu0 0.0
    %116 = vmatprep.subr.mxu0 0.0
    %117 = vmatpush2.msra.mxu0 0.0
    %118 = vmatprep.subr.mxu0 0.0
    %119 = vmatpush2.msra.mxu0 0.0
    %120 = vmatprep.subr.mxu0 0.0
    %121 = vmatpush2.msra.mxu0 0.0
    %122 = vmatprep.subr.mxu0 0.0
    %123 = vmatpush2.msra.mxu0 0.0
    %124 = vmatprep.subr.mxu0 0.0
    %125 = vmatpush2.msra.mxu0 0.0
    %126 = vmatprep.subr.mxu0 0.0
    %127 = vmatpush2.msra.mxu0 0.0
    %128 = vmatprep.subr.mxu0 0.0
    %129 = vmatpush2.msra.mxu0 0.0
    %130 = vmatprep.subr.mxu0 0.0
    %131 = vmatpush2.msra.mxu0 0.0
    %132 = vmatprep.subr.mxu0 0.0
    %133 = vmatpush2.msra.mxu0 0.0
    %134 = vmatprep.subr.mxu0 0.0
    %135 = vmatpush2.msra.mxu0 0.0
    %136 = vmatprep.mubr.f32.mxu0 0.0
    %137 = vmatmul.mubr.f32.gmra.mxu0 %v67
    %v138 = vpop.f32.mrf.mxu0
    %v139 = vadd.f32 %v58, %v138
    %v140 = vpop.f32.mrf.mxu0
    %v141 = vadd.f32 %v62, %v140
    %142 = vmatprep.mubr.f32.mxu0 0.0
    %143 = vmatmul.mubr.f32.gmra.mxu0 %v70
    %v144 = vpop.f32.mrf.mxu0
    %v145 = vadd.f32 %v58, %v144
    %v146 = vpop.f32.mrf.mxu0
    %v147 = vadd.f32 %v62, %v146
    %148 = vdwg.mxu0
    %149 = vst [vmem:[#allocation7] sm:$0xff] %v139
    %150 = vst [vmem:[#allocation7 + $0x8] sm:$0xff] %v141
    %151 = vst [vmem:[#allocation7 + $0x10] sm:$0xff] %v145
    %152 = vst [vmem:[#allocation7 + $0x18] sm:$0xff] %v147
    // Predicated region
    $region22: #{tpu_custom_call.1} parent=1 // pred_check
      _
    $region23: #{tpu_custom_call.1} parent=1 // pred_check_branch
      %154 = sbr.rel (0) target = $region25
    $region24: #{tpu_custom_call.1} parent=1 // pred_region
      %s156 = ssub.s32 512, 512
      %157 = vsyncadd [#allocation4], %s156
      %s158 = sshll.u32 [#allocation7], 4
      %s159 = int_to_ptr.vmem [resolvable:$true] %s158
      %164 = dma.vmem_to_hbm [thread:$0]  %s159, 512, %s3, [#allocation4], 256, 256, 16
    $region25: #{tpu_custom_call.1} parent=1 // pred_fallthru
      _
    // Predicated region
    $region26: #{tpu_custom_call.1} parent=1 // pred_check
      _
    $region27: #{tpu_custom_call.1} parent=1 // pred_check_branch
      %166 = sbr.rel (0) target = $region29
    $region28: #{tpu_custom_call.1} parent=1 // pred_region
      %167 = dma.done [#allocation4], 512
    $region29: #{tpu_custom_call.1} parent=1 // pred_fallthru
      _
    %168 = vsyncpa [#allocation3], 1
    %169 = vsyncpa [#allocation6], 1
    %170 = vsyncpa [#allocation4], 1

</llo_original>
